<compile_context>
chip_gen: v5e
topology: v5e:2x2
jax: 0.10.0
libtpu: 0.0.40
codegen_flags: <defaults>
</compile_context>

<pallas_src>
import jax
import jax.numpy as jnp
from jax.experimental import pallas as pl
from jax.experimental.pallas import tpu as pltpu

LANE = 128               # vreg lane width
MAX_TILE_ROWS = 4096     # 4096*128*4B = 2 MiB/block (f32); ~8 MiB pipelined in+out,
                         # under v5e's 16 MiB scoped-VMEM default (v6e/v7x: 32 MiB).
SMALL_N_FASTPATH = 4096  # below this, custom-call launch/layout overhead dominates


def _round_up(a, m):
    return -(-a // m) * m


def logistic_kernel(w_ref, b_ref, x_ref, o_ref):
    # Linear(1,1) collapses to an elementwise fused multiply-add over a
    # lane-dense [tile_rows, 128] block; sigmoid's exp runs on the EUP slot.
    w = w_ref[0]
    b = b_ref[0]
    z = x_ref[...].astype(jnp.float32) * w + b
    o_ref[...] = jax.nn.sigmoid(z).astype(o_ref.dtype)


def logistic_regression(x, w, b, *, force_pallas=False):
    """sigmoid(x @ w.T + b) for x:(N,1), w:(1,1), b:(1,) — tiled Pallas TPU kernel."""
    n = x.shape[0]
    n_elems = n  # in_features == 1 -> N scalars

    # Preserve floating I/O dtype (bf16 callers keep halved HBM traffic); math is f32.
    io_dtype = x.dtype if jnp.issubdtype(x.dtype, jnp.floating) else jnp.float32
    x_flat = x.reshape(-1).astype(io_dtype)
    w1 = w.reshape(1).astype(jnp.float32)
    b1 = b.reshape(1).astype(jnp.float32)

    # Small-N fast path: at tiny sizes the pad/launch/slice cost more than the
    # whole computation — let XLA's fused elementwise kernel handle it.
    if n_elems < SMALL_N_FASTPATH and not force_pallas:
        z = x_flat.astype(jnp.float32) * w1[0] + b1[0]
        return jax.nn.sigmoid(z).astype(io_dtype).reshape(n, 1)

    # Lane-dense [rows, 128] view; pad only to the next multiple of 128.
    rows = pl.cdiv(n_elems, LANE)
    pad = rows * LANE - n_elems
    if pad:
        x_flat = jnp.pad(x_flat, (0, pad))
    x2 = x_flat.reshape(rows, LANE)

    # Tile: sublane-aligned, VMEM-capped, and split into >= 2 grid steps when
    # possible so v7x's two TensorCores both stream (grid axis is "parallel").
    if rows <= 8:
        tile_rows = rows  # single block == full array (always a legal block shape)
    else:
        tile_rows = min(MAX_TILE_ROWS, _round_up(-(-rows // 2), 8))
    grid = pl.cdiv(rows, tile_rows)

    itemsize = jnp.dtype(io_dtype).itemsize
    cost = pl.CostEstimate(
        flops=2 * rows * LANE,                       # mul + add per element
        transcendentals=rows * LANE,                 # one exp per element
        bytes_accessed=2 * rows * LANE * itemsize,   # read x + write out
    )

    out2 = pl.pallas_call(
        logistic_kernel,
        out_shape=jax.ShapeDtypeStruct((rows, LANE), io_dtype),
        grid=(grid,),
        in_specs=[
            pl.BlockSpec(memory_space=pltpu.MemorySpace.SMEM),   # weight scalar
            pl.BlockSpec(memory_space=pltpu.MemorySpace.SMEM),   # bias scalar
            pl.BlockSpec((tile_rows, LANE), lambda i: (i, 0)),   # x tile (VMEM)
        ],
        out_specs=pl.BlockSpec((tile_rows, LANE), lambda i: (i, 0)),
        compiler_params=pltpu.CompilerParams(
            dimension_semantics=("parallel",)),
        cost_estimate=cost,
    )(w1, b1, x2)

    out_flat = out2.reshape(-1)
    if pad:
        out_flat = out_flat[:n_elems]   # drop lane padding of the last row only
    return out_flat.reshape(n, 1)


if __name__ == "__main__":
    key = jax.random.PRNGKey(0)
    kx, kw, kb = jax.random.split(key, 3)

    # Input matching the module's usage: x = np.random.rand(100, 1)
    x = jax.random.uniform(kx, (100, 1), dtype=jnp.float32)

    # Deterministic parameter init mimicking nn.Linear(1, 1):
    # PyTorch uses U(-1/sqrt(fan_in), 1/sqrt(fan_in)) with fan_in = 1 -> U(-1, 1).
    w = jax.random.uniform(kw, (1, 1), dtype=jnp.float32, minval=-1.0, maxval=1.0)
    b = jax.random.uniform(kb, (1,), dtype=jnp.float32, minval=-1.0, maxval=1.0)

    # Exercise the Pallas kernel explicitly (force past the small-N fast path).
    out = logistic_regression(x, w, b, force_pallas=True)
    out = jax.block_until_ready(out)

    # Reference check in plain JAX.
    ref = jax.nn.sigmoid(x @ w.T + b)
    assert out.shape == (100, 1)
    assert jnp.allclose(out, ref, atol=1e-5, rtol=1e-5), "pallas path mismatch vs reference"

    # Also verify the small-N fast path agrees.
    fast = logistic_regression(x, w, b)
    assert jnp.allclose(fast, ref, atol=1e-5, rtol=1e-5), "fast path mismatch vs reference"

    print("KERNEL_OK")
</pallas_src>

<mosaic_0001>
module attributes {stable_mosaic.version = 11 : i64} {
  func.func @logistic_kernel(%arg0: i32, %arg1: memref<1xf32, #tpu.memory_space<smem>>, %arg2: memref<1xf32, #tpu.memory_space<smem>>, %arg3: memref<1x128xf32, #tpu.memory_space<vmem>>, %arg4: memref<1x128xf32, #tpu.memory_space<vmem>>) attributes {dimension_semantics = [#tpu.dimension_semantics<parallel>], iteration_bounds = array<i64: 1>, scalar_prefetch = 0 : i64, scratch_operands = 0 : i64, tpu.core_type = #tpu.core_type<tc>, window_params = [{transform_indices = @transform_0, window_bounds = array<i64: 1>}, {transform_indices = @transform_1, window_bounds = array<i64: 1>}, {transform_indices = @transform_2, window_bounds = array<i64: 1, 128>}, {transform_indices = @transform_3, window_bounds = array<i64: 1, 128>}]} {
    %c0 = arith.constant 0 : index
    %0 = memref.load %arg1[%c0] : memref<1xf32, #tpu.memory_space<smem>>
    %c0_0 = arith.constant 0 : index
    %1 = memref.load %arg2[%c0_0] : memref<1xf32, #tpu.memory_space<smem>>
    %c0_1 = arith.constant 0 : index
    %c0_2 = arith.constant 0 : index
    %2 = vector.load %arg3[%c0_1, %c0_2] : memref<1x128xf32, #tpu.memory_space<vmem>>, vector<1x128xf32>
    %3 = vector.broadcast %0 : f32 to vector<1x128xf32>
    %4 = arith.mulf %2, %3 : vector<1x128xf32>
    %5 = vector.broadcast %1 : f32 to vector<1x128xf32>
    %6 = arith.addf %4, %5 : vector<1x128xf32>
    %7 = arith.negf %6 : vector<1x128xf32>
    %8 = math.exp %7 : vector<1x128xf32>
    %cst = arith.constant 1.000000e+00 : f32
    %9 = vector.broadcast %cst : f32 to vector<1x128xf32>
    %10 = arith.addf %9, %8 : vector<1x128xf32>
    %11 = arith.divf %9, %10 : vector<1x128xf32>
    %c0_3 = arith.constant 0 : index
    %c0_4 = arith.constant 0 : index
    %12 = vector.load %arg4[%c0_3, %c0_4] : memref<1x128xf32, #tpu.memory_space<vmem>>, vector<1x128xf32>
    tpu.vector_store %arg4[%c0_3, %c0_4], %11 {strides = array<i32>} : memref<1x128xf32, #tpu.memory_space<vmem>>, vector<1x128xf32>,
    return
  }
  func.func @transform_0(%arg0: i32) -> i32 {
    %c0_i32 = arith.constant 0 : i32
    %c0_i32_0 = arith.constant 0 : i32
    return %c0_i32 : i32
  }
  func.func @transform_1(%arg0: i32) -> i32 {
    %c0_i32 = arith.constant 0 : i32
    %c0_i32_0 = arith.constant 0 : i32
    return %c0_i32 : i32
  }
  func.func @transform_2(%arg0: i32) -> (i32, i32) {
    %c0_i32 = arith.constant 0 : i32
    %c0_i32_0 = arith.constant 0 : i32
    return %arg0, %c0_i32 : i32, i32
  }
  func.func @transform_3(%arg0: i32) -> (i32, i32) {
    %c0_i32 = arith.constant 0 : i32
    %c0_i32_0 = arith.constant 0 : i32
    return %arg0, %c0_i32 : i32, i32
  }
}

</mosaic_0001>

<llo_original>
// kernel: tpu_custom_call.1
$region0: #{tpu_custom_call.1}
  #allocation0 [shape = 'u32[]', space=smem, size = 0x4, offset = 0x4, fixed_abs, tag = 'smem constant byte address 0x4 - core index']
  #allocation1 [shape = 'u32[72,128]{1,0:T(1,128)}', space=vmem, size = 0x9000, scoped, tag = 'internal scratch']
  #allocation2 [shape = 'f32[1]{0:T(128)S(6)}', space=smem, size = 0x200, scoped, tag = 'scoped memory for tpu_custom_call.1']
  #allocation3 [shape = 'f32[1]{0:T(128)S(6)}', space=smem, size = 0x200, scoped, tag = 'scoped memory for tpu_custom_call.1']
  %s0 = inlined_call_operand.<no memory space> [shape: f32[1], index: 0, kind: input, shape index: {}]
  %s1 = inlined_call_operand.<no memory space> [shape: f32[1], index: 1, kind: input, shape index: {}]
  %s2 = inlined_call_operand.vmem [shape: f32[1,128], index: 2, kind: input, shape index: {}]
  %s3 = inlined_call_operand.hbm [shape: f32[1,128], index: 3, kind: output, shape index: {}]
  %s4 = sld [smem:[#allocation0]]
  $region22: #{tpu_custom_call.1} parent=0
    _
  %s6 = ssub.s32 1, %s4
  %s7 = scalar_select 0, %s6, %s4
  %8 = sst [smem:[#allocation2]] %s0
  %9 = sst [smem:[#allocation3]] %s1
  $region1: #{tpu_custom_call.1} parent=0
    #allocation4 [shape = 'u8[512]{0}', space=vmem, size = 0x400, scoped, tag = 'output window, operand 0, single buffered']
    #allocation5 [shape = 's32[1]{0}', space=sflag, size = 0x4, scoped, tag = 'scoped memory for tpu_custom_call.1']
    %10 = vsyncpa [#allocation5], 0
    // Predicated region
    $region2: #{tpu_custom_call.1} parent=1 // pred_check
      _
    $region3: #{tpu_custom_call.1} parent=1 // pred_check_branch
      %12 = sbr.rel (0) target = $region5
    $region4: #{tpu_custom_call.1} parent=1 // pred_region
      _
    $region5: #{tpu_custom_call.1} parent=1 // pred_fallthru
      _
    // Predicated region
    $region6: #{tpu_custom_call.1} parent=1 // pred_check
      _
    $region7: #{tpu_custom_call.1} parent=1 // pred_check_branch
      %14 = sbr.rel (0) target = $region9
    $region8: #{tpu_custom_call.1} parent=1 // pred_region
      _
    $region9: #{tpu_custom_call.1} parent=1 // pred_fallthru
      _
    // Predicated region
    $region10: #{tpu_custom_call.1} parent=1 // pred_check
      _
    $region11: #{tpu_custom_call.1} parent=1 // pred_check_branch
      %16 = sbr.rel (0) target = $region13
    $region12: #{tpu_custom_call.1} parent=1 // pred_region
      _
    $region13: #{tpu_custom_call.1} parent=1 // pred_fallthru
      _
    %s17 = sld [smem:[#allocation2]]
    %s18 = sld [smem:[#allocation3]]
    %v19 = vld [vmem:[%s2] sm:$0x1]
    %v20 = vstv %s17
    %v21 = vmul.f32 %v19, %v20
    %v22 = vstv %s18
    %v23 = vadd.f32 %v21, %v22
    %v24 = vxor.u32 %v23, 2147483648
    %v25 = vmul.f32 %v24, 1.442695
    %v26 = vpow.pop %v25
    %v27 = vadd.f32 %v26, 1.0
    %v28 = vrcp.pop %v27
    %v29 = vmul.f32 %v27, %v28
    %v30 = vsub.f32 1.0, %v29
    %v31 = vmul.f32 %v28, %v30
    %v32 = vadd.f32 %v28, %v31
    %vm33 = vweird.f32 %v27
    %vm34 = vweird.f32 %v28
    %vm35 = vmor %vm33, %vm34
    %v36 = vsel %vm35, %v28, %v32
    %v37 = vand.u32 2147483647, %v27
    %vm38 = vcmp.eq.f32.partialorder %v37, 8.507059e+37
    %v39 = vand.u32 %v27, 2147483648
    %v40 = vor.u32 1.1754944e-38, %v39
    %v41 = vsel %vm38, %v40, %v36
    %v42 = vmul.f32 1.0, %v41
    %43 = vst [vmem:[#allocation4] sm:$0x1] %v42
    // Predicated region
    $region14: #{tpu_custom_call.1} parent=1 // pred_check
      _
    $region15: #{tpu_custom_call.1} parent=1 // pred_check_branch
      %45 = sbr.rel (0) target = $region17
    $region16: #{tpu_custom_call.1} parent=1 // pred_region
      %47 = vsyncadd [#allocation5], 0
      %s49 = sshll.u32 [#allocation4], 4
      %s50 = int_to_ptr.vmem [resolvable:$true] %s49
      %s51 = sshll.u32 %s3, 4
      %s52 = int_to_ptr.hbm [resolvable:$true] %s51
      %54 = dma.vmem_to_hbm [thread:$0]  %s50, 16, %s52, [#allocation5]
    $region17: #{tpu_custom_call.1} parent=1 // pred_fallthru
      _
    // Predicated region
    $region18: #{tpu_custom_call.1} parent=1 // pred_check
      _
    $region19: #{tpu_custom_call.1} parent=1 // pred_check_branch
      %56 = sbr.rel (0) target = $region21
    $region20: #{tpu_custom_call.1} parent=1 // pred_region
      %58 = dma.done [#allocation5], 16
    $region21: #{tpu_custom_call.1} parent=1 // pred_fallthru
      _
    %59 = vsyncpa [#allocation5], 1

</llo_original>
